<compile_context>
chip_gen: v7x
topology: tpu7x:2x2x1
jax: 0.10.0
libtpu: 0.0.40
codegen_flags: <defaults>
</compile_context>

<pallas_src>
import functools

import jax
import jax.numpy as jnp
from jax.experimental import pallas as pl
from jax.experimental.pallas import tpu as pltpu

_LANE = 128
_SUBLANE = 8
_BN_EPS = 1e-5
_NORM_EPS_SQ = 1e-24   # == (1e-12)**2 -> same clamp as F.normalize on the norm


def _round_up(n, m):
    return (n + m - 1) // m * m


def _pad2(a, rows, cols):
    return jnp.pad(a, ((0, rows - a.shape[0]), (0, cols - a.shape[1])))


def _leaky_relu(x, slope=0.01):
    # max(x, slope*x) == leaky_relu(x) for 0 < slope < 1; 2 VALU ops vs 3.
    return jnp.maximum(x, slope * x)


def _align_dim(d, mxu):
    a = _round_up(d, _LANE)
    if mxu >= 256 and d > _LANE:
        a = _round_up(d, mxu)      # feed full 256-wide MXU passes on v6e/v7x
    return a


def _chip_config():
    kind = ""
    try:
        kind = jax.devices()[0].device_kind.lower()
    except Exception:
        pass
    if "v7" in kind or "tpu7" in kind:
        # 64 MiB physical VMEM, 2 TensorCores, 256-wide MXU.
        return dict(row_tile=512, vmem_limit=48 * 1024 * 1024, mxu=256,
                    ew_bf16=True, two_cores=True)
    if "v6" in kind:
        # 128 MiB VMEM, 256-wide MXU, bf16 VALU.
        return dict(row_tile=1024, vmem_limit=96 * 1024 * 1024, mxu=256,
                    ew_bf16=True, two_cores=False)
    if "v5" in kind:
        # 128 MiB VMEM, 128-wide MXU, no bf16 VALU.
        return dict(row_tile=1024, vmem_limit=96 * 1024 * 1024, mxu=128,
                    ew_bf16=False, two_cores=False)
    # Unknown / emulated: conservative defaults.
    return dict(row_tile=256, vmem_limit=32 * 1024 * 1024, mxu=128,
                ew_bf16=False, two_cores=False)


def _pick_row_tile(n, row_tile, dims, out_itemsize, vmem_limit, two_cores):
    """Largest sublane-aligned row tile that (a) lets both v7x cores get work
    and (b) keeps resident weights + double-buffered stream tiles in budget."""
    f_in_p, h0_p, h1_p, out_p = dims
    target = -(-n // 2) if (two_cores and n > _SUBLANE) else n
    tn = max(_SUBLANE, min(row_tile, _round_up(target, _SUBLANE)))

    # Resident weights/biases (constant index_map) are double-buffered by the
    # default pipeline; count them twice.  (pl.Buffered(1) on the resident
    # specs would halve this if it ever becomes the limiter.)
    resident = 2 * (2 * (f_in_p * h0_p + h0_p * h1_p + h1_p * out_p)
                    + 4 * (h0_p + h1_p + out_p))

    def estimate(t):
        stream = 2 * t * f_in_p * 2 + 2 * t * out_p * out_itemsize
        interm = 3 * t * max(h0_p, h1_p, out_p) * 4   # f32 temporaries
        return resident + stream + interm

    while tn > _SUBLANE and estimate(tn) > 0.75 * vmem_limit:
        tn = max(_SUBLANE, _round_up(tn // 2, _SUBLANE))
    return tn


def _mlp_kernel(x_ref, w0_ref, b0_ref, w1_ref, b1_ref, w2_ref, b2_ref, o_ref,
                *, ew_bf16):
    ew = jnp.bfloat16 if ew_bf16 else jnp.float32

    # Layer 0 (the BatchNorm affine is already folded into w0/b0).
    h = jnp.dot(x_ref[...], w0_ref[...], preferred_element_type=jnp.float32)
    h = _leaky_relu((h + b0_ref[...]).astype(ew)).astype(jnp.bfloat16)
    # Layer 1.
    h = jnp.dot(h, w1_ref[...], preferred_element_type=jnp.float32)
    h = _leaky_relu((h + b1_ref[...]).astype(ew)).astype(jnp.bfloat16)
    # Layer 2: keep f32 elementwise (feeds the L2 normalize).
    h = jnp.dot(h, w2_ref[...], preferred_element_type=jnp.float32)
    h = _leaky_relu(h + b2_ref[...])

    # F.normalize: x / max(||x||, 1e-12) == x * rsqrt(max(||x||^2, 1e-24)).
    # Padded output columns are exactly zero, so they don't affect the norm.
    sq = jnp.sum(h * h, axis=1, keepdims=True)
    o_ref[...] = (h * jax.lax.rsqrt(jnp.maximum(sq, _NORM_EPS_SQ))).astype(o_ref.dtype)


def prepare_params(params, *, mxu=128):
    """Pad + pre-cast weights ONCE (call outside the per-step jit).
    w0/b0 stay f32 because the data-dependent BN fold happens per call."""
    f_in, h0 = params["w0"].shape
    h1 = params["w1"].shape[1]
    out = params["w2"].shape[1]
    f_in_p = _align_dim(f_in, mxu)
    h0_p = _align_dim(h0, mxu)
    h1_p = _align_dim(h1, mxu)
    out_p = _align_dim(out, mxu)
    return {
        "gamma": params["gamma"].astype(jnp.float32),
        "beta": params["beta"].astype(jnp.float32),
        "w0f": _pad2(params["w0"].astype(jnp.float32), f_in_p, h0_p),
        "b0f": _pad2(params["b0"].astype(jnp.float32), 1, h0_p),
        "w1": _pad2(params["w1"].astype(jnp.float32), h0_p, h1_p).astype(jnp.bfloat16),
        "b1": _pad2(params["b1"].astype(jnp.float32), 1, h1_p),
        "w2": _pad2(params["w2"].astype(jnp.float32), h1_p, out_p).astype(jnp.bfloat16),
        "b2": _pad2(params["b2"].astype(jnp.float32), 1, out_p),
    }


def mlp_forward(x, prepped, *, output_size, row_tile=512,
                vmem_limit=32 * 1024 * 1024, ew_bf16=False, two_cores=False,
                out_dtype=jnp.float32):
    """x: [N, input_size] float32. prepped: dict from prepare_params."""
    n, f_in = x.shape
    f_in_p, h0_p = prepped["w0f"].shape
    h1_p = prepped["w1"].shape[1]
    out_p = prepped["w2"].shape[1]
    out_itemsize = 4 if out_dtype == jnp.float32 else 2

    # ---- BatchNorm1d stats (training mode, biased var) in a single pass ----
    xf = x.astype(jnp.float32)
    mean = jnp.mean(xf, axis=0, keepdims=True)                  # [1, F]
    ex2 = jnp.mean(xf * xf, axis=0, keepdims=True)
    var = jnp.maximum(ex2 - mean * mean, 0.0)                   # biased
    scale = prepped["gamma"] * jax.lax.rsqrt(var + _BN_EPS)     # [1, F]
    shift = prepped["beta"] - mean * scale                      # [1, F]
    scale_p = jnp.pad(scale, ((0, 0), (0, f_in_p - f_in)))
    shift_p = jnp.pad(shift, ((0, 0), (0, f_in_p - f_in)))

    # ---- Fold BN affine into layer 0 (scale rows of W0 in f32, then bf16) ----
    w0 = (prepped["w0f"] * scale_p[0][:, None]).astype(jnp.bfloat16)
    b0 = prepped["b0f"] + shift_p @ prepped["w0f"]              # [1, H0] f32

    # ---- Batch tiling: lane-dense, sublane-aligned, VMEM-budgeted ----
    tn = _pick_row_tile(n, row_tile, (f_in_p, h0_p, h1_p, out_p),
                        out_itemsize, vmem_limit, two_cores)
    n_p = _round_up(n, tn)
    grid = (n_p // tn,)

    x_p = jnp.pad(xf.astype(jnp.bfloat16), ((0, n_p - n), (0, f_in_p - f_in)))

    row_in_spec = pl.BlockSpec((tn, f_in_p), lambda i: (i, 0))
    row_out_spec = pl.BlockSpec((tn, out_p), lambda i: (i, 0))

    def resident(shape):
        # Constant index_map -> fetched once, kept in VMEM across the grid.
        return pl.BlockSpec(shape, lambda i: (0, 0))

    w_bytes = 2 * (f_in_p * h0_p + h0_p * h1_p + h1_p * out_p)
    flops = 2 * n_p * (f_in_p * h0_p + h0_p * h1_p + h1_p * out_p)
    bytes_accessed = (n_p * f_in_p * 2 + n_p * out_p * out_itemsize
                      + w_bytes + 4 * (h0_p + h1_p + out_p))

    out_padded = pl.pallas_call(
        functools.partial(_mlp_kernel, ew_bf16=ew_bf16),
        out_shape=jax.ShapeDtypeStruct((n_p, out_p), out_dtype),
        grid=grid,
        in_specs=[
            row_in_spec,
            resident((f_in_p, h0_p)), resident((1, h0_p)),
            resident((h0_p, h1_p)), resident((1, h1_p)),
            resident((h1_p, out_p)), resident((1, out_p)),
        ],
        out_specs=row_out_spec,
        compiler_params=pltpu.CompilerParams(
            dimension_semantics=("parallel",),
            vmem_limit_bytes=vmem_limit,
        ),
        cost_estimate=pl.CostEstimate(
            flops=flops, transcendentals=n_p, bytes_accessed=bytes_accessed),
    )(x_p, w0, b0, prepped["w1"], prepped["b1"], prepped["w2"], prepped["b2"])

    # Drop padded rows / padded output columns.
    return out_padded[:n, :output_size]


def init_params(key, input_size, hidden_sizes, output_size):
    """Deterministic synthetic init. Layer dims follow the PyTorch __init__:
       Linear(input_size, hidden_sizes[0]),
       Linear(hidden_sizes[i], hidden_sizes[i+1]) for i in 1..len-3,
       Linear(hidden_sizes[-1], output_size)."""
    dims = [(input_size, hidden_sizes[0])]
    for i in range(1, len(hidden_sizes) - 2):
        dims.append((hidden_sizes[i], hidden_sizes[i + 1]))
    dims.append((hidden_sizes[-1], output_size))
    assert len(dims) == 3, "this script instantiates a 3-layer MLP"

    keys = jax.random.split(key, 2 * len(dims))
    params = {
        # BatchNorm1d affine params (gamma=1, beta=0 as in PyTorch default init)
        "gamma": jnp.ones((1, input_size), jnp.float32),
        "beta": jnp.zeros((1, input_size), jnp.float32),
    }
    for li, (fan_in, fan_out) in enumerate(dims):
        bound = 1.0 / jnp.sqrt(fan_in)
        # stored as [in, out] (transposed vs. PyTorch's [out, in]) -> x @ W
        w = jax.random.uniform(keys[2 * li], (fan_in, fan_out),
                               jnp.float32, -bound, bound)
        b = jax.random.uniform(keys[2 * li + 1], (1, fan_out),
                               jnp.float32, -bound, bound)
        params[f"w{li}"] = w
        params[f"b{li}"] = b
    return params


if __name__ == "__main__":
    key = jax.random.PRNGKey(0)
    k_x, k_p = jax.random.split(key)

    batch = 8
    input_size = 16
    hidden_sizes = [32, 32, 32, 32]   # equal widths -> layer chain is consistent
    output_size = 8

    cfg = _chip_config()
    params = init_params(k_p, input_size, hidden_sizes, output_size)
    prepped = prepare_params(params, mxu=cfg["mxu"])   # pad + cast ONCE
    x = jax.random.normal(k_x, (batch, input_size), jnp.float32)

    fwd = jax.jit(functools.partial(
        mlp_forward, output_size=output_size, row_tile=cfg["row_tile"],
        vmem_limit=cfg["vmem_limit"], ew_bf16=cfg["ew_bf16"],
        two_cores=cfg["two_cores"]))
    out = fwd(x, prepped)
    jax.block_until_ready(out)

    assert out.shape == (batch, output_size)
    assert bool(jnp.all(jnp.isfinite(out)))
    # rows should be (approximately) unit-norm after F.normalize
    norms = jnp.linalg.norm(out, axis=1)
    assert bool(jnp.all(jnp.abs(norms - 1.0) < 1e-2))
    print("KERNEL_OK")
</pallas_src>

<mosaic_0001>
module attributes {stable_mosaic.version = 11 : i64} {
  func.func @_mlp_kernel(%arg0: i32, %arg1: memref<8x128xbf16, #tpu.memory_space<vmem>>, %arg2: memref<128x128xbf16, #tpu.memory_space<vmem>>, %arg3: memref<1x128xf32, #tpu.memory_space<vmem>>, %arg4: memref<128x128xbf16, #tpu.memory_space<vmem>>, %arg5: memref<1x128xf32, #tpu.memory_space<vmem>>, %arg6: memref<128x128xbf16, #tpu.memory_space<vmem>>, %arg7: memref<1x128xf32, #tpu.memory_space<vmem>>, %arg8: memref<8x128xf32, #tpu.memory_space<vmem>>) attributes {dimension_semantics = [#tpu.dimension_semantics<parallel>], iteration_bounds = array<i64: 1>, scalar_prefetch = 0 : i64, scratch_operands = 0 : i64, tpu.core_type = #tpu.core_type<tc>, window_params = [{transform_indices = @transform_0, window_bounds = array<i64: 8, 128>}, {pipeline_mode = #tpu.pipeline_mode<synchronous>, transform_indices = @transform_1, window_bounds = array<i64: 128, 128>}, {pipeline_mode = #tpu.pipeline_mode<synchronous>, transform_indices = @transform_2, window_bounds = array<i64: 1, 128>}, {pipeline_mode = #tpu.pipeline_mode<synchronous>, transform_indices = @transform_3, window_bounds = array<i64: 128, 128>}, {pipeline_mode = #tpu.pipeline_mode<synchronous>, transform_indices = @transform_4, window_bounds = array<i64: 1, 128>}, {pipeline_mode = #tpu.pipeline_mode<synchronous>, transform_indices = @transform_5, window_bounds = array<i64: 128, 128>}, {pipeline_mode = #tpu.pipeline_mode<synchronous>, transform_indices = @transform_6, window_bounds = array<i64: 1, 128>}, {transform_indices = @transform_7, window_bounds = array<i64: 8, 128>}]} {
    %c0 = arith.constant 0 : index
    %c0_0 = arith.constant 0 : index
    %0 = vector.load %arg1[%c0, %c0_0] : memref<8x128xbf16, #tpu.memory_space<vmem>>, vector<8x128xbf16>
    %c0_1 = arith.constant 0 : index
    %c0_2 = arith.constant 0 : index
    %1 = vector.load %arg2[%c0_1, %c0_2] : memref<128x128xbf16, #tpu.memory_space<vmem>>, vector<128x128xbf16>
    %cst = arith.constant dense<0.000000e+00> : vector<8x128xf32>
    %2 = tpu.matmul %0, %1, %cst {dimension_numbers = #tpu.dot_dimension_numbers<[1], [0], [0], [1], [0, 0, 1, 1], [], []>} : vector<8x128xbf16>, vector<128x128xbf16>, vector<8x128xf32> -> vector<8x128xf32>
    %c0_3 = arith.constant 0 : index
    %c0_4 = arith.constant 0 : index
    %3 = vector.load %arg3[%c0_3, %c0_4] : memref<1x128xf32, #tpu.memory_space<vmem>>, vector<1x128xf32>
    %4 = vector.broadcast %3 : vector<1x128xf32> to vector<8x128xf32>
    %5 = arith.addf %2, %4 : vector<8x128xf32>
    %cst_5 = arith.constant 0.00999999977 : f32
    %6 = vector.broadcast %cst_5 : f32 to vector<8x128xf32>
    %7 = arith.mulf %6, %5 : vector<8x128xf32>
    %8 = arith.maximumf %5, %7 : vector<8x128xf32>
    %9 = arith.truncf %8 : vector<8x128xf32> to vector<8x128xbf16>
    %c0_6 = arith.constant 0 : index
    %c0_7 = arith.constant 0 : index
    %10 = vector.load %arg4[%c0_6, %c0_7] : memref<128x128xbf16, #tpu.memory_space<vmem>>, vector<128x128xbf16>
    %cst_8 = arith.constant dense<0.000000e+00> : vector<8x128xf32>
    %11 = tpu.matmul %9, %10, %cst_8 {dimension_numbers = #tpu.dot_dimension_numbers<[1], [0], [0], [1], [0, 0, 1, 1], [], []>} : vector<8x128xbf16>, vector<128x128xbf16>, vector<8x128xf32> -> vector<8x128xf32>
    %c0_9 = arith.constant 0 : index
    %c0_10 = arith.constant 0 : index
    %12 = vector.load %arg5[%c0_9, %c0_10] : memref<1x128xf32, #tpu.memory_space<vmem>>, vector<1x128xf32>
    %13 = vector.broadcast %12 : vector<1x128xf32> to vector<8x128xf32>
    %14 = arith.addf %11, %13 : vector<8x128xf32>
    %cst_11 = arith.constant 0.00999999977 : f32
    %15 = vector.broadcast %cst_11 : f32 to vector<8x128xf32>
    %16 = arith.mulf %15, %14 : vector<8x128xf32>
    %17 = arith.maximumf %14, %16 : vector<8x128xf32>
    %18 = arith.truncf %17 : vector<8x128xf32> to vector<8x128xbf16>
    %c0_12 = arith.constant 0 : index
    %c0_13 = arith.constant 0 : index
    %19 = vector.load %arg6[%c0_12, %c0_13] : memref<128x128xbf16, #tpu.memory_space<vmem>>, vector<128x128xbf16>
    %cst_14 = arith.constant dense<0.000000e+00> : vector<8x128xf32>
    %20 = tpu.matmul %18, %19, %cst_14 {dimension_numbers = #tpu.dot_dimension_numbers<[1], [0], [0], [1], [0, 0, 1, 1], [], []>} : vector<8x128xbf16>, vector<128x128xbf16>, vector<8x128xf32> -> vector<8x128xf32>
    %c0_15 = arith.constant 0 : index
    %c0_16 = arith.constant 0 : index
    %21 = vector.load %arg7[%c0_15, %c0_16] : memref<1x128xf32, #tpu.memory_space<vmem>>, vector<1x128xf32>
    %22 = vector.broadcast %21 : vector<1x128xf32> to vector<8x128xf32>
    %23 = arith.addf %20, %22 : vector<8x128xf32>
    %cst_17 = arith.constant 0.00999999977 : f32
    %24 = vector.broadcast %cst_17 : f32 to vector<8x128xf32>
    %25 = arith.mulf %24, %23 : vector<8x128xf32>
    %26 = arith.maximumf %23, %25 : vector<8x128xf32>
    %27 = arith.mulf %26, %26 : vector<8x128xf32>
    %cst_18 = arith.constant dense<0.000000e+00> : vector<8xf32>
    %28 = vector.multi_reduction <add>, %27, %cst_18 [1] : vector<8x128xf32> to vector<8xf32>
    %29 = vector.shape_cast %28 : vector<8xf32> to vector<8x1xf32>
    %cst_19 = arith.constant 1.000000e-24 : f32
    %30 = vector.broadcast %cst_19 : f32 to vector<8x1xf32>
    %31 = arith.maximumf %29, %30 : vector<8x1xf32>
    %32 = math.rsqrt %31 : vector<8x1xf32>
    %33 = vector.broadcast %32 : vector<8x1xf32> to vector<8x128xf32>
    %34 = arith.mulf %26, %33 : vector<8x128xf32>
    %c0_20 = arith.constant 0 : index
    %c0_21 = arith.constant 0 : index
    %35 = vector.load %arg8[%c0_20, %c0_21] : memref<8x128xf32, #tpu.memory_space<vmem>>, vector<8x128xf32>
    tpu.vector_store %arg8[%c0_20, %c0_21], %34 {strides = array<i32>} : memref<8x128xf32, #tpu.memory_space<vmem>>, vector<8x128xf32>,
    return
  }
  func.func @transform_0(%arg0: i32) -> (i32, i32) {
    %c0_i32 = arith.constant 0 : i32
    %c0_i32_0 = arith.constant 0 : i32
    return %arg0, %c0_i32 : i32, i32
  }
  func.func @transform_1(%arg0: i32) -> (i32, i32) {
    %c0_i32 = arith.constant 0 : i32
    %c0_i32_0 = arith.constant 0 : i32
    %c0_i32_1 = arith.constant 0 : i32
    return %c0_i32, %c0_i32_0 : i32, i32
  }
  func.func @transform_2(%arg0: i32) -> (i32, i32) {
    %c0_i32 = arith.constant 0 : i32
    %c0_i32_0 = arith.constant 0 : i32
    %c0_i32_1 = arith.constant 0 : i32
    return %c0_i32, %c0_i32_0 : i32, i32
  }
  func.func @transform_3(%arg0: i32) -> (i32, i32) {
    %c0_i32 = arith.constant 0 : i32
    %c0_i32_0 = arith.constant 0 : i32
    %c0_i32_1 = arith.constant 0 : i32
    return %c0_i32, %c0_i32_0 : i32, i32
  }
  func.func @transform_4(%arg0: i32) -> (i32, i32) {
    %c0_i32 = arith.constant 0 : i32
    %c0_i32_0 = arith.constant 0 : i32
    %c0_i32_1 = arith.constant 0 : i32
    return %c0_i32, %c0_i32_0 : i32, i32
  }
  func.func @transform_5(%arg0: i32) -> (i32, i32) {
    %c0_i32 = arith.constant 0 : i32
    %c0_i32_0 = arith.constant 0 : i32
    %c0_i32_1 = arith.constant 0 : i32
    return %c0_i32, %c0_i32_0 : i32, i32
  }
  func.func @transform_6(%arg0: i32) -> (i32, i32) {
    %c0_i32 = arith.constant 0 : i32
    %c0_i32_0 = arith.constant 0 : i32
    %c0_i32_1 = arith.constant 0 : i32
    return %c0_i32, %c0_i32_0 : i32, i32
  }
  func.func @transform_7(%arg0: i32) -> (i32, i32) {
    %c0_i32 = arith.constant 0 : i32
    %c0_i32_0 = arith.constant 0 : i32
    return %arg0, %c0_i32 : i32, i32
  }
}

</mosaic_0001>

<llo_original>
// kernel: mlp_forward.1
$region0: #{mlp_forward.1}
  #allocation0 [shape = 'u32[]', space=smem, size = 0x4, offset = 0x4, fixed_abs, tag = 'smem constant byte address 0x4 - core index']
  #allocation1 [shape = 'u32[144,128]{1,0:T(1,128)}', space=vmem, size = 0x12000, scoped, tag = 'internal scratch']
  %s0 = inlined_call_operand.vmem [shape: bf16[8,128], index: 0, kind: input, shape index: {}]
  %s1 = inlined_call_operand.vmem [shape: bf16[128,128], index: 1, kind: input, shape index: {}]
  %s2 = inlined_call_operand.vmem [shape: f32[1,128], index: 2, kind: input, shape index: {}]
  %s3 = inlined_call_operand.vmem [shape: bf16[128,128], index: 3, kind: input, shape index: {}]
  %s4 = inlined_call_operand.vmem [shape: f32[1,128], index: 4, kind: input, shape index: {}]
  %s5 = inlined_call_operand.vmem [shape: bf16[128,128], index: 5, kind: input, shape index: {}]
  %s6 = inlined_call_operand.vmem [shape: f32[1,128], index: 6, kind: input, shape index: {}]
  %s7 = inlined_call_operand.hbm [shape: f32[8,128], index: 7, kind: output, shape index: {}]
  %s8 = sld [smem:[#allocation0]]
  $region38: #{mlp_forward.1} parent=0
    _
  %s10 = ssub.s32 1, %s8
  %s11 = scalar_select 0, %s10, %s8
  $region1: #{mlp_forward.1} parent=0
    #allocation2 [shape = 'u8[4096]{0}', space=vmem, size = 0x1000, scoped, tag = 'output window, operand 0, single buffered']
    #allocation3 [shape = 's32[1]{0}', space=sflag, size = 0x4, scoped, tag = 'scoped memory for mlp_forward.1']
    %12 = vsyncpa [#allocation3], 0
    // Predicated region
    $region2: #{mlp_forward.1} parent=1 // pred_check
      _
    $region3: #{mlp_forward.1} parent=1 // pred_check_branch
      %14 = sbr.rel (0) target = $region5
    $region4: #{mlp_forward.1} parent=1 // pred_region
      _
    $region5: #{mlp_forward.1} parent=1 // pred_fallthru
      _
    // Predicated region
    $region6: #{mlp_forward.1} parent=1 // pred_check
      _
    $region7: #{mlp_forward.1} parent=1 // pred_check_branch
      %16 = sbr.rel (0) target = $region9
    $region8: #{mlp_forward.1} parent=1 // pred_region
      _
    $region9: #{mlp_forward.1} parent=1 // pred_fallthru
      _
    // Predicated region
    $region10: #{mlp_forward.1} parent=1 // pred_check
      _
    $region11: #{mlp_forward.1} parent=1 // pred_check_branch
      %18 = sbr.rel (0) target = $region13
    $region12: #{mlp_forward.1} parent=1 // pred_region
      _
    $region13: #{mlp_forward.1} parent=1 // pred_fallthru
      _
    // Predicated region
    $region14: #{mlp_forward.1} parent=1 // pred_check
      _
    $region15: #{mlp_forward.1} parent=1 // pred_check_branch
      %20 = sbr.rel (0) target = $region17
    $region16: #{mlp_forward.1} parent=1 // pred_region
      _
    $region17: #{mlp_forward.1} parent=1 // pred_fallthru
      _
    // Predicated region
    $region18: #{mlp_forward.1} parent=1 // pred_check
      _
    $region19: #{mlp_forward.1} parent=1 // pred_check_branch
      %22 = sbr.rel (0) target = $region21
    $region20: #{mlp_forward.1} parent=1 // pred_region
      _
    $region21: #{mlp_forward.1} parent=1 // pred_fallthru
      _
    // Predicated region
    $region22: #{mlp_forward.1} parent=1 // pred_check
      _
    $region23: #{mlp_forward.1} parent=1 // pred_check_branch
      %24 = sbr.rel (0) target = $region25
    $region24: #{mlp_forward.1} parent=1 // pred_region
      _
    $region25: #{mlp_forward.1} parent=1 // pred_fallthru
      _
    // Predicated region
    $region26: #{mlp_forward.1} parent=1 // pred_check
      _
    $region27: #{mlp_forward.1} parent=1 // pred_check_branch
      %26 = sbr.rel (0) target = $region29
    $region28: #{mlp_forward.1} parent=1 // pred_region
      _
    $region29: #{mlp_forward.1} parent=1 // pred_fallthru
      _
    %v28 = vld [vmem:[%s0] sm:$0xf]
    %v29 = vld [vmem:[%s1] sm:$0xf]
    %v30 = vld [vmem:[%s1 + $0x4] sm:$0xf]
    %v31 = vld [vmem:[%s1 + $0x8] sm:$0xf]
    %v32 = vld [vmem:[%s1 + $0xc] sm:$0xf]
    %v33 = vld [vmem:[%s1 + $0x10] sm:$0xf]
    %v34 = vld [vmem:[%s1 + $0x14] sm:$0xf]
    %v35 = vld [vmem:[%s1 + $0x18] sm:$0xf]
    %v36 = vld [vmem:[%s1 + $0x1c] sm:$0xf]
    %v37 = vld [vmem:[%s1 + $0x20] sm:$0xf]
    %v38 = vld [vmem:[%s1 + $0x24] sm:$0xf]
    %v39 = vld [vmem:[%s1 + $0x28] sm:$0xf]
    %v40 = vld [vmem:[%s1 + $0x2c] sm:$0xf]
    %v41 = vld [vmem:[%s1 + $0x30] sm:$0xf]
    %v42 = vld [vmem:[%s1 + $0x34] sm:$0xf]
    %v43 = vld [vmem:[%s1 + $0x38] sm:$0xf]
    %v44 = vld [vmem:[%s1 + $0x3c] sm:$0xf]
    %v45 = vld [vmem:[%s2] sm:$0x1]
    %v47 = vlaneseq
    %v48 = vshrl.u32 %v47, 7
    %v49 = vsub.s32 0, %v48
    %v50 = vrot.slane %v45, %v49
    %v68 = vunpack.c.l.b16 %v29
    %v69 = vunpack.c.l.b16 %v30
    %v70 = vunpack.c.l.b16 %v31
    %v71 = vunpack.c.l.b16 %v32
    %v72 = vunpack.c.l.b16 %v33
    %v73 = vunpack.c.l.b16 %v34
    %v74 = vunpack.c.l.b16 %v35
    %v75 = vunpack.c.l.b16 %v36
    %v76 = vunpack.c.l.b16 %v37
    %v77 = vunpack.c.l.b16 %v38
    %v78 = vunpack.c.l.b16 %v39
    %v79 = vunpack.c.l.b16 %v40
    %v80 = vunpack.c.l.b16 %v41
    %v81 = vunpack.c.l.b16 %v42
    %v82 = vunpack.c.l.b16 %v43
    %v83 = vunpack.c.l.b16 %v44
    %v84 = vpack.c.b16 %v69, %v68
    %v85 = vpack.c.b16 %v71, %v70
    %v86 = vpack.c.b16 %v73, %v72
    %v87 = vpack.c.b16 %v75, %v74
    %v88 = vpack.c.b16 %v77, %v76
    %v89 = vpack.c.b16 %v79, %v78
    %v90 = vpack.c.b16 %v81, %v80
    %v91 = vpack.c.b16 %v83, %v82
    %100 = vmatprep.subr.bf16.mxu0 0
    %101 = vmatpush1.bf16.msra.mxu0 %v84
    %102 = vmatprep.subr.bf16.mxu0 0
    %103 = vmatpush1.bf16.msra.mxu0 %v85
    %104 = vmatprep.subr.bf16.mxu0 0
    %105 = vmatpush1.bf16.msra.mxu0 %v86
    %106 = vmatprep.subr.bf16.mxu0 0
    %107 = vmatpush1.bf16.msra.mxu0 %v87
    %108 = vmatprep.subr.bf16.mxu0 0
    %109 = vmatpush1.bf16.msra.mxu0 %v88
    %110 = vmatprep.subr.bf16.mxu0 0
    %111 = vmatpush1.bf16.msra.mxu0 %v89
    %112 = vmatprep.subr.bf16.mxu0 0
    %113 = vmatpush1.bf16.msra.mxu0 %v90
    %114 = vmatprep.subr.bf16.mxu0 0
    %115 = vmatpush1.bf16.msra.mxu0 %v91
    %116 = vmatprep.subr.bf16.mxu0 0
    %117 = vmatpush1.bf16.msra.mxu0 0
    %118 = vmatprep.subr.bf16.mxu0 0
    %119 = vmatpush1.bf16.msra.mxu0 0
    %120 = vmatprep.subr.bf16.mxu0 0
    %121 = vmatpush1.bf16.msra.mxu0 0
    %122 = vmatprep.subr.bf16.mxu0 0
    %123 = vmatpush1.bf16.msra.mxu0 0
    %124 = vmatprep.subr.bf16.mxu0 0
    %125 = vmatpush1.bf16.msra.mxu0 0
    %126 = vmatprep.subr.bf16.mxu0 0
    %127 = vmatpush1.bf16.msra.mxu0 0
    %128 = vmatprep.subr.bf16.mxu0 0
    %129 = vmatpush1.bf16.msra.mxu0 0
    %130 = vmatprep.subr.bf16.mxu0 0
    %131 = vmatpush1.bf16.msra.mxu0 0
    %132 = vmatprep.mubr.bf16.mxu0 0
    %133 = vmatmul.mubr.bf16.gmra.mrb[0].mxu0 %v28
    %v134 = vpop.f32.mrb[0].mxu0
    %v135 = vadd.f32 %v50, %v134
    %v136 = vpop.f32.mrb[0].mxu0
    %v137 = vpop.f32.mrb[0].mxu0
    %v138 = vpop.f32.mrb[0].mxu0
    %139 = vdwg.mxu0
    %v140 = vmul.f32 %v135, 0.01
    %v141 = vmax.f32 %v135, %v140
    %v142 = vpack.c.bf16 %v141, %v141
    %v143 = vld [vmem:[%s3] sm:$0xf]
    %v144 = vld [vmem:[%s3 + $0x4] sm:$0xf]
    %v145 = vld [vmem:[%s3 + $0x8] sm:$0xf]
    %v146 = vld [vmem:[%s3 + $0xc] sm:$0xf]
    %v147 = vld [vmem:[%s3 + $0x10] sm:$0xf]
    %v148 = vld [vmem:[%s3 + $0x14] sm:$0xf]
    %v149 = vld [vmem:[%s3 + $0x18] sm:$0xf]
    %v150 = vld [vmem:[%s3 + $0x1c] sm:$0xf]
    %v151 = vld [vmem:[%s3 + $0x20] sm:$0xf]
    %v152 = vld [vmem:[%s3 + $0x24] sm:$0xf]
    %v153 = vld [vmem:[%s3 + $0x28] sm:$0xf]
    %v154 = vld [vmem:[%s3 + $0x2c] sm:$0xf]
    %v155 = vld [vmem:[%s3 + $0x30] sm:$0xf]
    %v156 = vld [vmem:[%s3 + $0x34] sm:$0xf]
    %v157 = vld [vmem:[%s3 + $0x38] sm:$0xf]
    %v158 = vld [vmem:[%s3 + $0x3c] sm:$0xf]
    %v159 = vld [vmem:[%s4] sm:$0x1]
    %v161 = vlaneseq
    %v162 = vshrl.u32 %v161, 7
    %v163 = vsub.s32 0, %v162
    %v164 = vrot.slane %v159, %v163
    %v182 = vunpack.c.l.b16 %v143
    %v183 = vunpack.c.l.b16 %v144
    %v184 = vunpack.c.l.b16 %v145
    %v185 = vunpack.c.l.b16 %v146
    %v186 = vunpack.c.l.b16 %v147
    %v187 = vunpack.c.l.b16 %v148
    %v188 = vunpack.c.l.b16 %v149
    %v189 = vunpack.c.l.b16 %v150
    %v190 = vunpack.c.l.b16 %v151
    %v191 = vunpack.c.l.b16 %v152
    %v192 = vunpack.c.l.b16 %v153
    %v193 = vunpack.c.l.b16 %v154
    %v194 = vunpack.c.l.b16 %v155
    %v195 = vunpack.c.l.b16 %v156
    %v196 = vunpack.c.l.b16 %v157
    %v197 = vunpack.c.l.b16 %v158
    %v198 = vpack.c.b16 %v183, %v182
    %v199 = vpack.c.b16 %v185, %v184
    %v200 = vpack.c.b16 %v187, %v186
    %v201 = vpack.c.b16 %v189, %v188
    %v202 = vpack.c.b16 %v191, %v190
    %v203 = vpack.c.b16 %v193, %v192
    %v204 = vpack.c.b16 %v195, %v194
    %v205 = vpack.c.b16 %v197, %v196
    %214 = vmatprep.subr.bf16.mxu0 0
    %215 = vmatpush1.bf16.msra.mxu0 %v198
    %216 = vmatprep.subr.bf16.mxu0 0
    %217 = vmatpush1.bf16.msra.mxu0 %v199
    %218 = vmatprep.subr.bf16.mxu0 0
    %219 = vmatpush1.bf16.msra.mxu0 %v200
    %220 = vmatprep.subr.bf16.mxu0 0
    %221 = vmatpush1.bf16.msra.mxu0 %v201
    %222 = vmatprep.subr.bf16.mxu0 0
    %223 = vmatpush1.bf16.msra.mxu0 %v202
    %224 = vmatprep.subr.bf16.mxu0 0
    %225 = vmatpush1.bf16.msra.mxu0 %v203
    %226 = vmatprep.subr.bf16.mxu0 0
    %227 = vmatpush1.bf16.msra.mxu0 %v204
    %228 = vmatprep.subr.bf16.mxu0 0
    %229 = vmatpush1.bf16.msra.mxu0 %v205
    %230 = vmatprep.subr.bf16.mxu0 0
    %231 = vmatpush1.bf16.msra.mxu0 0
    %232 = vmatprep.subr.bf16.mxu0 0
    %233 = vmatpush1.bf16.msra.mxu0 0
    %234 = vmatprep.subr.bf16.mxu0 0
    %235 = vmatpush1.bf16.msra.mxu0 0
    %236 = vmatprep.subr.bf16.mxu0 0
    %237 = vmatpush1.bf16.msra.mxu0 0
    %238 = vmatprep.subr.bf16.mxu0 0
    %239 = vmatpush1.bf16.msra.mxu0 0
    %240 = vmatprep.subr.bf16.mxu0 0
    %241 = vmatpush1.bf16.msra.mxu0 0
    %242 = vmatprep.subr.bf16.mxu0 0
    %243 = vmatpush1.bf16.msra.mxu0 0
    %244 = vmatprep.subr.bf16.mxu0 0
    %245 = vmatpush1.bf16.msra.mxu0 0
    %246 = vmatprep.mubr.bf16.mxu0 0
    %247 = vmatmul.mubr.bf16.gmra.mrb[0].mxu0 %v142
    %v248 = vpop.f32.mrb[0].mxu0
    %v249 = vadd.f32 %v164, %v248
    %v250 = vpop.f32.mrb[0].mxu0
    %v251 = vpop.f32.mrb[0].mxu0
    %v252 = vpop.f32.mrb[0].mxu0
    %253 = vdwg.mxu0
    %v254 = vmul.f32 %v249, 0.01
    %v255 = vmax.f32 %v249, %v254
    %v256 = vpack.c.bf16 %v255, %v255
    %v257 = vld [vmem:[%s5] sm:$0xf]
    %v258 = vld [vmem:[%s5 + $0x4] sm:$0xf]
    %v259 = vld [vmem:[%s5 + $0x8] sm:$0xf]
    %v260 = vld [vmem:[%s5 + $0xc] sm:$0xf]
    %v261 = vld [vmem:[%s5 + $0x10] sm:$0xf]
    %v262 = vld [vmem:[%s5 + $0x14] sm:$0xf]
    %v263 = vld [vmem:[%s5 + $0x18] sm:$0xf]
    %v264 = vld [vmem:[%s5 + $0x1c] sm:$0xf]
    %v265 = vld [vmem:[%s5 + $0x20] sm:$0xf]
    %v266 = vld [vmem:[%s5 + $0x24] sm:$0xf]
    %v267 = vld [vmem:[%s5 + $0x28] sm:$0xf]
    %v268 = vld [vmem:[%s5 + $0x2c] sm:$0xf]
    %v269 = vld [vmem:[%s5 + $0x30] sm:$0xf]
    %v270 = vld [vmem:[%s5 + $0x34] sm:$0xf]
    %v271 = vld [vmem:[%s5 + $0x38] sm:$0xf]
    %v272 = vld [vmem:[%s5 + $0x3c] sm:$0xf]
    %v273 = vld [vmem:[%s6] sm:$0x1]
    %v275 = vlaneseq
    %v276 = vshrl.u32 %v275, 7
    %v277 = vsub.s32 0, %v276
    %v278 = vrot.slane %v273, %v277
    %v296 = vunpack.c.l.b16 %v257
    %v297 = vunpack.c.l.b16 %v258
    %v298 = vunpack.c.l.b16 %v259
    %v299 = vunpack.c.l.b16 %v260
    %v300 = vunpack.c.l.b16 %v261
    %v301 = vunpack.c.l.b16 %v262
    %v302 = vunpack.c.l.b16 %v263
    %v303 = vunpack.c.l.b16 %v264
    %v304 = vunpack.c.l.b16 %v265
    %v305 = vunpack.c.l.b16 %v266
    %v306 = vunpack.c.l.b16 %v267
    %v307 = vunpack.c.l.b16 %v268
    %v308 = vunpack.c.l.b16 %v269
    %v309 = vunpack.c.l.b16 %v270
    %v310 = vunpack.c.l.b16 %v271
    %v311 = vunpack.c.l.b16 %v272
    %v312 = vpack.c.b16 %v297, %v296
    %v313 = vpack.c.b16 %v299, %v298
    %v314 = vpack.c.b16 %v301, %v300
    %v315 = vpack.c.b16 %v303, %v302
    %v316 = vpack.c.b16 %v305, %v304
    %v317 = vpack.c.b16 %v307, %v306
    %v318 = vpack.c.b16 %v309, %v308
    %v319 = vpack.c.b16 %v311, %v310
    %328 = vmatprep.subr.bf16.mxu0 0
    %329 = vmatpush1.bf16.msra.mxu0 %v312
    %330 = vmatprep.subr.bf16.mxu0 0
    %331 = vmatpush1.bf16.msra.mxu0 %v313
    %332 = vmatprep.subr.bf16.mxu0 0
    %333 = vmatpush1.bf16.msra.mxu0 %v314
    %334 = vmatprep.subr.bf16.mxu0 0
    %335 = vmatpush1.bf16.msra.mxu0 %v315
    %336 = vmatprep.subr.bf16.mxu0 0
    %337 = vmatpush1.bf16.msra.mxu0 %v316
    %338 = vmatprep.subr.bf16.mxu0 0
    %339 = vmatpush1.bf16.msra.mxu0 %v317
    %340 = vmatprep.subr.bf16.mxu0 0
    %341 = vmatpush1.bf16.msra.mxu0 %v318
    %342 = vmatprep.subr.bf16.mxu0 0
    %343 = vmatpush1.bf16.msra.mxu0 %v319
    %344 = vmatprep.subr.bf16.mxu0 0
    %345 = vmatpush1.bf16.msra.mxu0 0
    %346 = vmatprep.subr.bf16.mxu0 0
    %347 = vmatpush1.bf16.msra.mxu0 0
    %348 = vmatprep.subr.bf16.mxu0 0
    %349 = vmatpush1.bf16.msra.mxu0 0
    %350 = vmatprep.subr.bf16.mxu0 0
    %351 = vmatpush1.bf16.msra.mxu0 0
    %352 = vmatprep.subr.bf16.mxu0 0
    %353 = vmatpush1.bf16.msra.mxu0 0
    %354 = vmatprep.subr.bf16.mxu0 0
    %355 = vmatpush1.bf16.msra.mxu0 0
    %356 = vmatprep.subr.bf16.mxu0 0
    %357 = vmatpush1.bf16.msra.mxu0 0
    %358 = vmatprep.subr.bf16.mxu0 0
    %359 = vmatpush1.bf16.msra.mxu0 0
    %360 = vmatprep.mubr.bf16.mxu0 0
    %361 = vmatmul.mubr.bf16.gmra.mrb[0].mxu0 %v256
    %v362 = vpop.f32.mrb[0].mxu0
    %v363 = vadd.f32 %v278, %v362
    %v364 = vpop.f32.mrb[0].mxu0
    %v365 = vpop.f32.mrb[0].mxu0
    %v366 = vpop.f32.mrb[0].mxu0
    %367 = vdwg.mxu0
    %v368 = vmul.f32 %v363, 0.01
    %v369 = vmax.f32 %v363, %v368
    %v370 = vmul.f32 %v369, %v369
    %371 = vadd.xlane.f32.xlu0 %v370
    %v372 = vpop.xlane.xlu0 %371
    %v373 = vmax.f32 %v372, 1e-24
    %v374 = vrsqrt.pop %v373
    %v375 = vmul.f32 %v369, %v374
    %376 = vst [vmem:[#allocation2] sm:$0xff] %v375
    // Predicated region
    $region30: #{mlp_forward.1} parent=1 // pred_check
      _
    $region31: #{mlp_forward.1} parent=1 // pred_check_branch
      %378 = sbr.rel (0) target = $region33
    $region32: #{mlp_forward.1} parent=1 // pred_region
      %s380 = ssub.s32 128, 128
      %381 = vsyncadd [#allocation3], %s380
      %s383 = sshll.u32 [#allocation2], 4
      %s384 = int_to_ptr.vmem [resolvable:$true] %s383
      %386 = dma.vmem_to_hbm [thread:$0]  %s384, 128, %s7, [#allocation3]
    $region33: #{mlp_forward.1} parent=1 // pred_fallthru
      _
    // Predicated region
    $region34: #{mlp_forward.1} parent=1 // pred_check
      _
    $region35: #{mlp_forward.1} parent=1 // pred_check_branch
      %388 = sbr.rel (0) target = $region37
    $region36: #{mlp_forward.1} parent=1 // pred_region
      %389 = dma.done [#allocation3], 128
    $region37: #{mlp_forward.1} parent=1 // pred_fallthru
      _
    %390 = vsyncpa [#allocation3], 1

</llo_original>
